<compile_context>
chip_gen: v6e
topology: v6e:2x2x1
jax: 0.10.0
libtpu: 0.0.40
codegen_flags: <defaults>
</compile_context>

<pallas_src>
import functools

import jax
import jax.numpy as jnp
from jax import lax
from jax.experimental import pallas as pl
from jax.experimental.pallas import tpu as pltpu

_MIB = 1024 * 1024


def _physical_vmem_bytes():
    try:
        return int(pltpu.get_tpu_info().vmem_capacity_bytes)
    except Exception:  # fall back to the smallest current generation (v7x per-TC)
        return 64 * _MIB


def _vmem_limit(footprint_bytes, physical_bytes):
    return int(min(physical_bytes - 4 * _MIB,
                   max(footprint_bytes + 4 * _MIB, 16 * _MIB)))


# --------------------------------------------------------------------------
# Fused single-pass kernel: mean over L + gate Linear + elementwise scale.
# --------------------------------------------------------------------------
def _stoken_fused_kernel(x_ref, wt_ref, bl_ref, bs_ref, out_ref, *, seq_len):
    x = x_ref[...]                                               # (Bt, L, D)
    # mean over L — accumulate in f32 even for bf16 inputs
    m = jnp.sum(x, axis=1, dtype=jnp.float32) * (1.0 / seq_len)  # (Bt, D) f32
    # gate = sigmoid(relu(m @ W^T + b)) + bias   (single MXU matmul, f32 acc)
    g = jnp.dot(m.astype(wt_ref.dtype), wt_ref[...],
                preferred_element_type=jnp.float32)
    g = g + bl_ref[...]
    g = jax.nn.sigmoid(jnp.maximum(g, 0.0)) + bs_ref[...]        # (Bt, D) f32
    g = g.astype(x.dtype)                                        # single downcast
    # fully vectorized, lane/sublane-dense scale of the whole tile
    out_ref[...] = (g[:, None, :] * x).astype(out_ref.dtype)


# --------------------------------------------------------------------------
# Two-pass fallback (per-batch (L, D) slab too large for VMEM).
# Pass 1: reduce x over L chunks -> gate (B, D).   Pass 2: stream the scale.
# --------------------------------------------------------------------------
def _stoken_gate_kernel(x_ref, wt_ref, bl_ref, bs_ref, g_ref, acc_ref, *,
                        seq_len, block_l, mask_l):
    li = pl.program_id(1)

    @pl.when(li == 0)
    def _():
        acc_ref[...] = jnp.zeros_like(acc_ref)

    x = x_ref[...]                                               # (1, block_l, D)
    if mask_l:  # last L chunk is padded: zero out out-of-bounds rows
        row = lax.broadcasted_iota(jnp.int32, x.shape, 1) + li * block_l
        x = jnp.where(row < seq_len, x, jnp.zeros_like(x))
    acc_ref[...] += jnp.sum(x, axis=1, dtype=jnp.float32)        # (1, D) f32

    @pl.when(li == pl.num_programs(1) - 1)
    def _():
        m = (acc_ref[...] * (1.0 / seq_len)).astype(wt_ref.dtype)
        g = jnp.dot(m, wt_ref[...], preferred_element_type=jnp.float32)
        g = g + bl_ref[...]
        g = jax.nn.sigmoid(jnp.maximum(g, 0.0)) + bs_ref[...]
        g_ref[...] = g.astype(g_ref.dtype)


def _stoken_scale_kernel(g_ref, x_ref, out_ref):
    g = g_ref[...]                                               # (1, D)
    out_ref[...] = (g[:, None, :] * x_ref[...]).astype(out_ref.dtype)


# --------------------------------------------------------------------------
# Wrapper
# --------------------------------------------------------------------------
def stoken_forward(x, w, b_lin, bias, *, block_b=None, block_l=None,
                   force_two_pass=False, donate_x=False):
    """x: (B, L, D). w: (D, D) PyTorch-layout Linear weight (out, in).
    b_lin: (D,). bias: (1, 1, D) SToken bias parameter."""
    B, L, D = x.shape
    itemsize = jnp.dtype(x.dtype).itemsize

    wt = jnp.asarray(w, x.dtype).T.reshape(D, D)       # (in, out): m @ wt == m @ W^T
    bl = jnp.asarray(b_lin, jnp.float32).reshape(1, D)  # keep gate path in f32
    bs = jnp.asarray(bias, jnp.float32).reshape(1, D)

    physical = _physical_vmem_bytes()
    # Keep all pipeline buffers under ~45% of physical VMEM (capped at 56 MiB):
    #   v5e/v6e (128 MiB) -> ~56 MiB,  v7x (64 MiB per TC) -> ~28 MiB.
    budget = min(int(physical * 0.45), 56 * _MIB)

    # Resident weight/bias buffers — Pallas double-buffers constant-index inputs.
    w_bytes = 2 * D * D * itemsize + 4 * 8 * D * 4      # W^T + 2 padded f32 bias rows
    per_batch = 4 * L * D * itemsize                    # x + out, double-buffered
    avail = budget - w_bytes

    two_pass = force_two_pass or (block_b is None and avail < per_batch)

    if not two_pass:
        # ---------------- fused single-pass path ----------------
        if block_b is None:
            block_b = max(1, min(B, avail // per_batch))
            if B > 1:  # >= 2 grid steps so both v7x TensorCores get work
                block_b = min(block_b, pl.cdiv(B, 2))
        grid = (pl.cdiv(B, block_b),)
        footprint = w_bytes + block_b * per_batch
        cost = pl.CostEstimate(
            flops=2 * B * D * D + 3 * B * L * D,
            transcendentals=B * D,
            bytes_accessed=2 * B * L * D * itemsize + D * D * itemsize)
        kernel = functools.partial(_stoken_fused_kernel, seq_len=L)
        return pl.pallas_call(
            kernel,
            out_shape=jax.ShapeDtypeStruct((B, L, D), x.dtype),
            grid_spec=pltpu.PrefetchScalarGridSpec(
                num_scalar_prefetch=0,
                grid=grid,
                in_specs=[
                    pl.BlockSpec((block_b, L, D), lambda i: (i, 0, 0)),  # x chunk
                    pl.BlockSpec((D, D), lambda i: (0, 0)),              # W^T (resident)
                    pl.BlockSpec((1, D), lambda i: (0, 0)),              # Linear bias
                    pl.BlockSpec((1, D), lambda i: (0, 0)),              # SToken bias
                ],
                out_specs=pl.BlockSpec((block_b, L, D), lambda i: (i, 0, 0)),
            ),
            compiler_params=pltpu.CompilerParams(
                dimension_semantics=("parallel",),
                vmem_limit_bytes=_vmem_limit(footprint, physical),
            ),
            cost_estimate=cost,
            input_output_aliases=({0: 0} if donate_x else {}),
        )(x, wt, bl, bs)

    # ---------------- two-pass split-L fallback ----------------
    if block_l is None:
        block_l = max(8, (max(avail, 0) // (4 * D * itemsize)) // 8 * 8)
    block_l = min(block_l, (L // 8) * 8) if L >= 8 else L
    mask_l = (L % block_l) != 0
    n_l = pl.cdiv(L, block_l)

    # Pass 1: gate precompute (sum over L chunks, then Linear/ReLU/Sigmoid).
    gate_kernel = functools.partial(_stoken_gate_kernel, seq_len=L,
                                    block_l=block_l, mask_l=mask_l)
    gate_footprint = 2 * block_l * D * itemsize + w_bytes + 2 * 8 * D * itemsize + 8 * D * 4
    g = pl.pallas_call(
        gate_kernel,
        out_shape=jax.ShapeDtypeStruct((B, D), x.dtype),
        grid_spec=pltpu.PrefetchScalarGridSpec(
            num_scalar_prefetch=0,
            grid=(B, n_l),
            in_specs=[
                pl.BlockSpec((1, block_l, D), lambda b, l: (b, l, 0)),
                pl.BlockSpec((D, D), lambda b, l: (0, 0)),
                pl.BlockSpec((1, D), lambda b, l: (0, 0)),
                pl.BlockSpec((1, D), lambda b, l: (0, 0)),
            ],
            out_specs=pl.BlockSpec((1, D), lambda b, l: (b, 0)),
            scratch_shapes=[pltpu.VMEM((1, D), jnp.float32)],
        ),
        compiler_params=pltpu.CompilerParams(
            dimension_semantics=("parallel", "arbitrary"),
            vmem_limit_bytes=_vmem_limit(gate_footprint, physical),
        ),
        cost_estimate=pl.CostEstimate(
            flops=2 * B * D * D + B * L * D,
            transcendentals=B * D,
            bytes_accessed=B * L * D * itemsize + D * D * itemsize),
    )(x, wt, bl, bs)

    # Pass 2: pure streaming scale, tiled freely over (B, L).
    scale_footprint = 4 * block_l * D * itemsize + 2 * 8 * D * itemsize
    return pl.pallas_call(
        _stoken_scale_kernel,
        out_shape=jax.ShapeDtypeStruct((B, L, D), x.dtype),
        grid_spec=pltpu.PrefetchScalarGridSpec(
            num_scalar_prefetch=0,
            grid=(B, n_l),
            in_specs=[
                pl.BlockSpec((1, D), lambda b, l: (b, 0)),
                pl.BlockSpec((1, block_l, D), lambda b, l: (b, l, 0)),
            ],
            out_specs=pl.BlockSpec((1, block_l, D), lambda b, l: (b, l, 0)),
        ),
        compiler_params=pltpu.CompilerParams(
            dimension_semantics=("parallel", "parallel"),
            vmem_limit_bytes=_vmem_limit(scale_footprint, physical),
        ),
        cost_estimate=pl.CostEstimate(
            flops=B * L * D,
            transcendentals=0,
            bytes_accessed=2 * B * L * D * itemsize + B * D * itemsize),
        input_output_aliases=({1: 0} if donate_x else {}),
    )(g, x)


def stoken_reference(x, w, b_lin, bias):
    """Pure-JAX reference matching the PyTorch forward."""
    m = jnp.mean(x, axis=1, keepdims=True)                     # (B, 1, D)
    g = jax.nn.sigmoid(jnp.maximum(m @ w.T + b_lin, 0.0))      # Linear -> ReLU -> Sigmoid
    return (g + bias.reshape(1, 1, -1)) * x


if __name__ == "__main__":
    # Small shapes consistent with the module: (batch, seq_len, dim).
    # B=3 exercises the padded-batch (cdiv) fused grid; L=20 exercises the
    # masked partial L-chunk in the two-pass fallback.
    B, L, D = 3, 20, 128
    key = jax.random.PRNGKey(0)
    kx, kw, kb, kbias = jax.random.split(key, 4)

    x = jax.random.normal(kx, (B, L, D), jnp.float32)
    w = jax.random.normal(kw, (D, D), jnp.float32) * (1.0 / jnp.sqrt(D))   # nn.Linear weight
    b_lin = jax.random.normal(kb, (D,), jnp.float32) * 0.01                # nn.Linear bias
    bias = jax.random.normal(kbias, (1, 1, D), jnp.float32) * (1.0 / jnp.sqrt(D))

    ref = stoken_reference(x, w, b_lin, bias)

    # Fused single-pass path (default).
    out = jax.block_until_ready(stoken_forward(x, w, b_lin, bias))
    assert out.shape == (B, L, D)
    assert jnp.allclose(out, ref, atol=1e-5, rtol=1e-5), float(jnp.max(jnp.abs(out - ref)))

    # Two-pass split-L fallback (used when the (L, D) slab exceeds VMEM budget).
    out2 = jax.block_until_ready(
        stoken_forward(x, w, b_lin, bias, force_two_pass=True, block_l=8))
    assert jnp.allclose(out2, ref, atol=1e-5, rtol=1e-5), float(jnp.max(jnp.abs(out2 - ref)))

    print("KERNEL_OK")
</pallas_src>

<mosaic_0001>
module attributes {stable_mosaic.version = 11 : i64} {
  func.func @_stoken_fused_kernel(%arg0: i32, %arg1: memref<2x20x128xf32, #tpu.memory_space<vmem>>, %arg2: memref<128x128xf32, #tpu.memory_space<vmem>>, %arg3: memref<1x128xf32, #tpu.memory_space<vmem>>, %arg4: memref<1x128xf32, #tpu.memory_space<vmem>>, %arg5: memref<2x20x128xf32, #tpu.memory_space<vmem>>) attributes {dimension_semantics = [#tpu.dimension_semantics<parallel>], iteration_bounds = array<i64: 2>, scalar_prefetch = 0 : i64, scratch_operands = 0 : i64, tpu.core_type = #tpu.core_type<tc>, window_params = [{transform_indices = @transform_0, window_bounds = array<i64: 2, 20, 128>}, {pipeline_mode = #tpu.pipeline_mode<synchronous>, transform_indices = @transform_1, window_bounds = array<i64: 128, 128>}, {pipeline_mode = #tpu.pipeline_mode<synchronous>, transform_indices = @transform_2, window_bounds = array<i64: 1, 128>}, {pipeline_mode = #tpu.pipeline_mode<synchronous>, transform_indices = @transform_3, window_bounds = array<i64: 1, 128>}, {transform_indices = @transform_4, window_bounds = array<i64: 2, 20, 128>}]} {
    %c0 = arith.constant 0 : index
    %c0_0 = arith.constant 0 : index
    %c0_1 = arith.constant 0 : index
    %0 = vector.load %arg1[%c0, %c0_0, %c0_1] : memref<2x20x128xf32, #tpu.memory_space<vmem>>, vector<2x20x128xf32>
    %cst = arith.constant dense<0.000000e+00> : vector<2x128xf32>
    %1 = vector.multi_reduction <add>, %0, %cst [1] : vector<2x20x128xf32> to vector<2x128xf32>
    %cst_2 = arith.constant 5.000000e-02 : f32
    %2 = vector.broadcast %cst_2 : f32 to vector<2x128xf32>
    %3 = arith.mulf %1, %2 : vector<2x128xf32>
    %c0_3 = arith.constant 0 : index
    %c0_4 = arith.constant 0 : index
    %4 = vector.load %arg2[%c0_3, %c0_4] : memref<128x128xf32, #tpu.memory_space<vmem>>, vector<128x128xf32>
    %cst_5 = arith.constant dense<0.000000e+00> : vector<2x128xf32>
    %5 = tpu.matmul %3, %4, %cst_5 {dimension_numbers = #tpu.dot_dimension_numbers<[1], [0], [0], [1], [0, 0, 1, 1], [], []>} : vector<2x128xf32>, vector<128x128xf32>, vector<2x128xf32> -> vector<2x128xf32>
    %c0_6 = arith.constant 0 : index
    %c0_7 = arith.constant 0 : index
    %6 = vector.load %arg3[%c0_6, %c0_7] : memref<1x128xf32, #tpu.memory_space<vmem>>, vector<1x128xf32>
    %7 = vector.broadcast %6 : vector<1x128xf32> to vector<2x128xf32>
    %8 = arith.addf %5, %7 : vector<2x128xf32>
    %cst_8 = arith.constant 0.000000e+00 : f32
    %9 = vector.broadcast %cst_8 : f32 to vector<2x128xf32>
    %10 = arith.maximumf %8, %9 : vector<2x128xf32>
    %11 = arith.negf %10 : vector<2x128xf32>
    %12 = math.exp %11 : vector<2x128xf32>
    %cst_9 = arith.constant 1.000000e+00 : f32
    %13 = vector.broadcast %cst_9 : f32 to vector<2x128xf32>
    %14 = arith.addf %13, %12 : vector<2x128xf32>
    %15 = arith.divf %13, %14 : vector<2x128xf32>
    %c0_10 = arith.constant 0 : index
    %c0_11 = arith.constant 0 : index
    %16 = vector.load %arg4[%c0_10, %c0_11] : memref<1x128xf32, #tpu.memory_space<vmem>>, vector<1x128xf32>
    %17 = vector.broadcast %16 : vector<1x128xf32> to vector<2x128xf32>
    %18 = arith.addf %15, %17 : vector<2x128xf32>
    %19 = vector.shape_cast %18 : vector<2x128xf32> to vector<2x1x128xf32>
    %20 = vector.broadcast %19 : vector<2x1x128xf32> to vector<2x20x128xf32>
    %21 = arith.mulf %20, %0 : vector<2x20x128xf32>
    %c0_12 = arith.constant 0 : index
    %c0_13 = arith.constant 0 : index
    %c0_14 = arith.constant 0 : index
    %22 = vector.load %arg5[%c0_12, %c0_13, %c0_14] : memref<2x20x128xf32, #tpu.memory_space<vmem>>, vector<2x20x128xf32>
    tpu.vector_store %arg5[%c0_12, %c0_13, %c0_14], %21 {strides = array<i32>} : memref<2x20x128xf32, #tpu.memory_space<vmem>>, vector<2x20x128xf32>,
    return
  }
  func.func @transform_0(%arg0: i32) -> (i32, i32, i32) {
    %c0_i32 = arith.constant 0 : i32
    %c0_i32_0 = arith.constant 0 : i32
    %c0_i32_1 = arith.constant 0 : i32
    return %arg0, %c0_i32, %c0_i32_0 : i32, i32, i32
  }
  func.func @transform_1(%arg0: i32) -> (i32, i32) {
    %c0_i32 = arith.constant 0 : i32
    %c0_i32_0 = arith.constant 0 : i32
    %c0_i32_1 = arith.constant 0 : i32
    return %c0_i32, %c0_i32_0 : i32, i32
  }
  func.func @transform_2(%arg0: i32) -> (i32, i32) {
    %c0_i32 = arith.constant 0 : i32
    %c0_i32_0 = arith.constant 0 : i32
    %c0_i32_1 = arith.constant 0 : i32
    return %c0_i32, %c0_i32_0 : i32, i32
  }
  func.func @transform_3(%arg0: i32) -> (i32, i32) {
    %c0_i32 = arith.constant 0 : i32
    %c0_i32_0 = arith.constant 0 : i32
    %c0_i32_1 = arith.constant 0 : i32
    return %c0_i32, %c0_i32_0 : i32, i32
  }
  func.func @transform_4(%arg0: i32) -> (i32, i32, i32) {
    %c0_i32 = arith.constant 0 : i32
    %c0_i32_0 = arith.constant 0 : i32
    %c0_i32_1 = arith.constant 0 : i32
    return %arg0, %c0_i32, %c0_i32_0 : i32, i32, i32
  }
}

</mosaic_0001>

<llo_original>
// kernel: tpu_custom_call.1
$region0: #{tpu_custom_call.1}
  #allocation0 [shape = 'u32[]', space=smem, size = 0x4, offset = 0x4, fixed_abs, tag = 'smem constant byte address 0x4 - core index']
  #allocation1 [shape = 'u32[144,128]{1,0:T(1,128)}', space=vmem, size = 0x12000, scoped, tag = 'internal scratch']
  %s0 = inlined_call_operand.hbm [shape: f32[3,20,128], index: 0, kind: input, shape index: {}]
  %s1 = inlined_call_operand.hbm [shape: f32[128,128], index: 1, kind: input, shape index: {}]
  %s2 = inlined_call_operand.vmem [shape: f32[1,128], index: 2, kind: input, shape index: {}]
  %s3 = inlined_call_operand.vmem [shape: f32[1,128], index: 3, kind: input, shape index: {}]
  %s4 = inlined_call_operand.hbm [shape: f32[3,20,128], index: 4, kind: output, shape index: {}]
  %s5 = sld [smem:[#allocation0]]
  $region57: #{tpu_custom_call.1} parent=0
    _
  %s7 = ssub.s32 1, %s5
  %s8 = scalar_select 0, %s7, %s5
  $region1: #{tpu_custom_call.1} parent=0
    #allocation2 [shape = 'u8[49152]{0}', space=vmem, size = 0xc000, scoped, tag = 'input window, operand 0']
    #allocation3 [shape = 's32[2]{0}', space=sflag, size = 0x8, scoped, tag = 'scoped memory for tpu_custom_call.1']
    #allocation4 [shape = 's32[2]{0}', space=sflag, size = 0x8, scoped, tag = 'scoped memory for tpu_custom_call.1']
    #allocation5 [shape = 'u8[65536]{0}', space=vmem, size = 0x10000, scoped, tag = 'input window, operand 1, single buffered']
    #allocation6 [shape = 's32[1]{0}', space=sflag, size = 0x4, scoped, tag = 'scoped memory for tpu_custom_call.1']
    #allocation7 [shape = 'u8[49152]{0}', space=vmem, size = 0xc000, scoped, tag = 'output window, operand 0']
    %9 = vsyncpa [#allocation3], 0
    %s10 = scalar_lea.sflag [#allocation3], 1
    %11 = vsyncpa %s10, 0
    %12 = vsyncpa [#allocation6], 0
    %13 = vsyncpa [#allocation4], 0
    %s14 = scalar_lea.sflag [#allocation4], 1
    %15 = vsyncpa %s14, 0
    loop: start=0, step=1, limit=4
    $region2: #{tpu_custom_call.1} parent=1 // loop_pre_header
      _
    $region3: #{tpu_custom_call.1} parent=1 // loop_header
      %s17 = sphi 0, %s21
      %p18 = scmp.ge.s32.totalorder %s17, 4
      %s27 = sphi 0, %s29
      %s30 = sphi 0, %s27
      %s31 = sphi 0, %s30
      %s47 = sphi 0, %s31
      %s51 = sphi 0, %s51
      %s53 = sphi 0, %s51
      %s54 = sphi 0, %s53
      %s68 = sphi 0, %s54
      %s72 = sphi 0, %s72
      %s74 = sphi 0, %s72
      %s75 = sphi 0, %s74
      %s89 = sphi 0, %s75
      %s93 = sphi 0, %s93
      %s95 = sphi 0, %s93
      %s96 = sphi 0, %s95
      %s110 = sphi 0, %s96
      %s116 = sphi 0, %s118
      %s119 = sphi 0, %s116
      %s120 = sphi 0, %s119
      %s136 = sphi 0, %s120
    $region4: #{tpu_custom_call.1} parent=1 // loop_header_branch
      %20 = sbr.rel (%p18) target = $region8
    $region5: #{tpu_custom_call.1} parent=1 // loop_body
      %s22 = ssub.s32 %s17, 1
      %s23 = ssub.s32 %s17, 2
      %s24 = sadd.s32 %s17, 1
      %s25 = ssub.s32 %s17, %s24
      %p26 = scmp.eq.s32.totalorder %s25, 0
      %s28 = sadd.s32 %s27, 1
      %s29 = scalar_select %p26, %s27, %s28
      %p32 = pneg %p26
      %p33 = scmp.eq.s32.totalorder %s17, 1
      %p34 = por %p32, %p33
      %p35 = scmp.ne.s32.totalorder %s27, %s30
      %p36 = scmp.eq.s32.totalorder %s17, 0
      %p37 = por %p35, %p36
      %p38 = scmp.ne.s32.totalorder %s27, %s30
      %p39 = scmp.eq.s32.totalorder %s22, 1
      %p40 = por %p38, %p39
      %p41 = scmp.ne.s32.totalorder %s30, %s31
      %p42 = scmp.eq.s32.totalorder %s22, 0
      %p43 = por %p41, %p42
      %p44 = scmp.ne.s32.totalorder %s30, %s31
      %p45 = scmp.eq.s32.totalorder %s23, 1
      %p46 = por %p44, %p45
      %p48 = scmp.ne.s32.totalorder %s31, %s47
      %p49 = scmp.eq.s32.totalorder %s23, 0
      %p50 = por %p48, %p49
      %s52 = sadd.s32 %s51, 1
      %p55 = scmp.eq.s32.totalorder %s17, 1
      %p56 = scmp.ne.s32.totalorder %s51, %s53
      %p57 = scmp.eq.s32.totalorder %s17, 0
      %p58 = por %p56, %p57
      %p59 = scmp.ne.s32.totalorder %s51, %s53
      %p60 = scmp.eq.s32.totalorder %s22, 1
      %p61 = por %p59, %p60
      %p62 = scmp.ne.s32.totalorder %s53, %s54
      %p63 = scmp.eq.s32.totalorder %s22, 0
      %p64 = por %p62, %p63
      %p65 = scmp.ne.s32.totalorder %s53, %s54
      %p66 = scmp.eq.s32.totalorder %s23, 1
      %p67 = por %p65, %p66
      %p69 = scmp.ne.s32.totalorder %s54, %s68
      %p70 = scmp.eq.s32.totalorder %s23, 0
      %p71 = por %p69, %p70
      %s73 = sadd.s32 %s72, 1
      %p76 = scmp.eq.s32.totalorder %s17, 1
      %p77 = scmp.ne.s32.totalorder %s72, %s74
      %p78 = scmp.eq.s32.totalorder %s17, 0
      %p79 = por %p77, %p78
      %p80 = scmp.ne.s32.totalorder %s72, %s74
      %p81 = scmp.eq.s32.totalorder %s22, 1
      %p82 = por %p80, %p81
      %p83 = scmp.ne.s32.totalorder %s74, %s75
      %p84 = scmp.eq.s32.totalorder %s22, 0
      %p85 = por %p83, %p84
      %p86 = scmp.ne.s32.totalorder %s74, %s75
      %p87 = scmp.eq.s32.totalorder %s23, 1
      %p88 = por %p86, %p87
      %p90 = scmp.ne.s32.totalorder %s75, %s89
      %p91 = scmp.eq.s32.totalorder %s23, 0
      %p92 = por %p90, %p91
      %s94 = sadd.s32 %s93, 1
      %p97 = scmp.eq.s32.totalorder %s17, 1
      %p98 = scmp.ne.s32.totalorder %s93, %s95
      %p99 = scmp.eq.s32.totalorder %s17, 0
      %p100 = por %p98, %p99
      %p101 = scmp.ne.s32.totalorder %s93, %s95
      %p102 = scmp.eq.s32.totalorder %s22, 1
      %p103 = por %p101, %p102
      %p104 = scmp.ne.s32.totalorder %s95, %s96
      %p105 = scmp.eq.s32.totalorder %s22, 0
      %p106 = por %p104, %p105
      %p107 = scmp.ne.s32.totalorder %s95, %s96
      %p108 = scmp.eq.s32.totalorder %s23, 1
      %p109 = por %p107, %p108
      %p111 = scmp.ne.s32.totalorder %s96, %s110
      %p112 = scmp.eq.s32.totalorder %s23, 0
      %p113 = por %p111, %p112
      %s114 = ssub.s32 %s17, %s24
      %p115 = scmp.eq.s32.totalorder %s114, 0
      %s117 = sadd.s32 %s116, 1
      %s118 = scalar_select %p115, %s116, %s117
      %p121 = pneg %p115
      %p122 = scmp.eq.s32.totalorder %s17, 1
      %p123 = por %p121, %p122
      %p124 = scmp.ne.s32.totalorder %s116, %s119
      %p125 = scmp.eq.s32.totalorder %s17, 0
      %p126 = por %p124, %p125
      %p127 = scmp.ne.s32.totalorder %s116, %s119
      %p128 = scmp.eq.s32.totalorder %s22, 1
      %p129 = por %p127, %p128
      %p130 = scmp.ne.s32.totalorder %s119, %s120
      %p131 = scmp.eq.s32.totalorder %s22, 0
      %p132 = por %p130, %p131
      %p133 = scmp.ne.s32.totalorder %s119, %s120
      %p134 = scmp.eq.s32.totalorder %s23, 1
      %p135 = por %p133, %p134
      %p137 = scmp.ne.s32.totalorder %s120, %s136
      %p138 = scmp.eq.s32.totalorder %s23, 0
      %p139 = por %p137, %p138
      %p140 = scmp.le.s32.totalorder 1, %s17
      %p141 = scmp.lt.s32.totalorder %s17, 3
      %p142 = pnand %p140, %p141
      %p143 = pneg %p142
      // Predicated region
      $region9: #{tpu_custom_call.1} parent=5 // pred_check
        _
      $region10: #{tpu_custom_call.1} parent=5 // pred_check_branch
        %145 = sbr.rel (%p142) target = $region12
      $region11: #{tpu_custom_call.1} parent=5 // pred_region
        %s146 = ssub.s32 %s17, 1
        // Predicated region
        $region13: #{tpu_custom_call.1} parent=11 // pred_check
          %p147 = pneg %p64
        $region14: #{tpu_custom_call.1} parent=11 // pred_check_branch
          %149 = sbr.rel (%p147) target = $region16
        $region15: #{tpu_custom_call.1} parent=11 // pred_region
          %s151 = ssub.s32 2048, 2048
          %152 = vsyncadd [#allocation6], %s151
          %s153 = sshll.u32 [#allocation5], 4
          %s154 = int_to_ptr.vmem [resolvable:$true] %s153
          %159 = dma.hbm_to_vmem [thread:$0]  %s1, 2048, %s154, [#allocation6], 128, 128, 8
        $region16: #{tpu_custom_call.1} parent=11 // pred_fallthru
          _
        // Predicated region
        $region17: #{tpu_custom_call.1} parent=11 // pred_check
          %p160 = pneg %p85
        $region18: #{tpu_custom_call.1} parent=11 // pred_check_branch
          %162 = sbr.rel (%p160) target = $region20
        $region19: #{tpu_custom_call.1} parent=11 // pred_region
          _
        $region20: #{tpu_custom_call.1} parent=11 // pred_fallthru
          _
        // Predicated region
        $region21: #{tpu_custom_call.1} parent=11 // pred_check
          %p163 = pneg %p106
        $region22: #{tpu_custom_call.1} parent=11 // pred_check_branch
          %165 = sbr.rel (%p163) target = $region24
        $region23: #{tpu_custom_call.1} parent=11 // pred_region
          _
        $region24: #{tpu_custom_call.1} parent=11 // pred_fallthru
          _
      $region12: #{tpu_custom_call.1} parent=5 // pred_fallthru
        _
      %p166 = scmp.lt.s32.totalorder %s17, 2
      // Predicated region
      $region25: #{tpu_custom_call.1} parent=5 // pred_check
        %p167 = pneg %p166
      $region26: #{tpu_custom_call.1} parent=5 // pred_check_branch
        %169 = sbr.rel (%p167) target = $region28
      $region27: #{tpu_custom_call.1} parent=5 // pred_region
        // Predicated region
        $region29: #{tpu_custom_call.1} parent=27 // pred_check
          %p170 = pneg %p37
        $region30: #{tpu_custom_call.1} parent=27 // pred_check_branch
          %172 = sbr.rel (%p170) target = $region32
        $region31: #{tpu_custom_call.1} parent=27 // pred_region
          %s173 = sand.u32 %s27, 1
          %s174 = scalar_lea.sflag [#allocation3], %s173
          %s175 = sand.u32 %s27, 1
          %s176 = smul.addr %s175, 48
          %s177 = scalar_lea.vmem [#allocation2], %s176
          %s178 = smul.u32 2, %s17
          %s179 = ssub.s32 3, %s178
          %p180 = scmp.lt.s32.totalorder %s179, 2
          %s181 = scalar_select %p180, %s179, 2
          %s182 = smul.u32 128, %s181
          %s183 = smul.u32 %s182, 3
          %s185 = ssub.s32 768, %s183
          %186 = vsyncadd %s174, %s185
          %p187 = scmp.ne.s32.totalorder 0, %s183
          %s188 = smul.addr %s178, 3
          %s189 = smul.addr %s188, 128
          %s190 = scalar_lea.hbm %s0, %s189
          %s191 = smul.u32 %s181, 3
          %s192 = smul.u32 8, %s191
          %s193 = sshll.u32 %s177, 4
          %s194 = int_to_ptr.vmem [resolvable:$true] %s193
          %s195 = sshll.u32 %s192, 4
          %199 = dma.hbm_to_vmem [thread:$0]  (%p187), %s190, %s195, %s194, %s174, 128, 128, 8
        $region32: #{tpu_custom_call.1} parent=27 // pred_fallthru
          _
      $region28: #{tpu_custom_call.1} parent=5 // pred_fallthru
        _
      %p200 = scmp.le.s32.totalorder 1, %s17
      %p201 = scmp.lt.s32.totalorder %s17, 3
      %p202 = pnand %p200, %p201
      %p203 = pneg %p202
      // Predicated region
      $region33: #{tpu_custom_call.1} parent=5 // pred_check
        _
      $region34: #{tpu_custom_call.1} parent=5 // pred_check_branch
        %205 = sbr.rel (%p202) target = $region36
      $region35: #{tpu_custom_call.1} parent=5 // pred_region
        %s206 = ssub.s32 %s17, 1
        %s207 = sand.u32 %s30, 1
        %s208 = scalar_lea.sflag [#allocation3], %s207
        %s209 = sand.u32 %s30, 1
        %s210 = smul.addr %s209, 48
        %s211 = scalar_lea.vmem [#allocation2], %s210
        // Predicated region
        $region37: #{tpu_custom_call.1} parent=35 // pred_check
          %p212 = pneg %p43
        $region38: #{tpu_custom_call.1} parent=35 // pred_check_branch
          %214 = sbr.rel (%p212) target = $region40
        $region39: #{tpu_custom_call.1} parent=35 // pred_region
          %215 = dma.done %s208, 768
        $region40: #{tpu_custom_call.1} parent=35 // pred_fallthru
          _
        // Predicated region
        $region41: #{tpu_custom_call.1} parent=35 // pred_check
          %p216 = pneg %p64
        $region42: #{tpu_custom_call.1} parent=35 // pred_check_branch
          %218 = sbr.rel (%p216) target = $region44
        $region43: #{tpu_custom_call.1} parent=35 // pred_region
          %219 = dma.done [#allocation6], 2048
        $region44: #{tpu_custom_call.1} parent=35 // pred_fallthru
          _
        %s220 = sand.u32 %s30, 1
        %s221 = scalar_lea.sflag [#allocation3], %s220
        %s222 = sand.u32 %s30, 1
        %s223 = smul.addr %s222, 48
        %s224 = scalar_lea.vmem [#allocation2], %s223
        %p225 = pneg %p43
        %p226 = pneg %p40
        %p227 = pneg %p64
        %p228 = pneg %p61
        %p229 = pneg %p85
        %p230 = pneg %p82
        %p231 = pneg %p106
        %p232 = pneg %p103
        %p233 = pneg %p132
        %p234 = pneg %p129
        %s235 = sand.u32 %s119, 1
        %s236 = scalar_lea.sflag [#allocation4], %s235
        %s237 = sand.u32 %s119, 1
        %s238 = smul.addr %s237, 48
        %s239 = scalar_lea.vmem [#allocation7], %s238
        %s240 = smul.u32 2, %s22
        %s241 = ssub.s32 3, %s240
        %p242 = scmp.lt.s32.totalorder %s241, 2
        %s243 = scalar_select %p242, %s241, 2
        %s244 = smul.u32 128, %s243
        %s245 = smul.u32 %s244, 3
        %s246 = smul.u32 2, %s22
        %s247 = ssub.s32 3, %s246
        %p248 = scmp.lt.s32.totalorder %s247, 2
        %s249 = scalar_select %p248, %s247, 2
        %s250 = smul.u32 128, %s249
        %s251 = smul.u32 %s250, 3
        %v252 = vld [vmem:[%s211] sm:$0xff]
        %v253 = vld [vmem:[%s211 + $0x8] sm:$0xff]
        %v254 = vld [vmem:[%s211 + $0x10] sm:$0xf]
        %v255 = vld [vmem:[%s211 + $0x18] sm:$0xff]
        %v256 = vld [vmem:[%s211 + $0x20] sm:$0xff]
        %v257 = vld [vmem:[%s211 + $0x28] sm:$0xf]
        %v258 = vadd.f32 %v252, %v253
        %vm259 = vcmask 1043456
        %v260 = vsel %vm259, %v254, 0.0
        %v261 = vadd.f32 %v258, %v260
        %v262 = vrot.slane %v261, 4
        %v263 = vadd.f32 %v261, %v262
        %v264 = vrot.slane %v263, 2
        %v265 = vadd.f32 %v263, %v264
        %v266 = vrot.slane %v265, 1
        %v267 = vadd.f32 %v265, %v266
        %v268 = vadd.f32 %v255, %v256
        %v269 = vsel %vm259, %v257, 0.0
        %v270 = vadd.f32 %v268, %v269
        %v271 = vrot.slane %v270, 4
        %v272 = vadd.f32 %v270, %v271
        %v273 = vrot.slane %v272, 2
        %v274 = vadd.f32 %v272, %v273
        %v275 = vrot.slane %v274, 1
        %v276 = vadd.f32 %v274, %v275
        %v277 = vmul.f32 %v267, 0.05
        %v278 = vmul.f32 %v276, 0.05
        %v279 = vld [vmem:[#allocation5] sm:$0xff]
        %v280 = vld [vmem:[#allocation5 + $0x8] sm:$0xff]
        %v281 = vld [vmem:[#allocation5 + $0x10] sm:$0xff]
        %v282 = vld [vmem:[#allocation5 + $0x18] sm:$0xff]
        %v283 = vld [vmem:[#allocation5 + $0x20] sm:$0xff]
        %v284 = vld [vmem:[#allocation5 + $0x28] sm:$0xff]
        %v285 = vld [vmem:[#allocation5 + $0x30] sm:$0xff]
        %v286 = vld [vmem:[#allocation5 + $0x38] sm:$0xff]
        %v287 = vld [vmem:[#allocation5 + $0x40] sm:$0xff]
        %v288 = vld [vmem:[#allocation5 + $0x48] sm:$0xff]
        %v289 = vld [vmem:[#allocation5 + $0x50] sm:$0xff]
        %v290 = vld [vmem:[#allocation5 + $0x58] sm:$0xff]
        %v291 = vld [vmem:[#allocation5 + $0x60] sm:$0xff]
        %v292 = vld [vmem:[#allocation5 + $0x68] sm:$0xff]
        %v293 = vld [vmem:[#allocation5 + $0x70] sm:$0xff]
        %v294 = vld [vmem:[#allocation5 + $0x78] sm:$0xff]
        %v295 = vld [vmem:[%s2] sm:$0x1]
        %v297 = vlaneseq
        %v298 = vshrl.u32 %v297, 7
        %v299 = vsub.s32 0, %v298
        %v300 = vrot.slane %v295, %v299
        %vm304 = vcmask 1041409
        %v305 = vsel %vm304, %v278, %v277
        %307 = vmatprep.subr.mxu0 0.0
        %308 = vmatpush1.msra.mxu0 %v294
        %309 = vmatprep.subr.mxu0 0.0
        %310 = vmatpush1.msra.mxu0 %v293
        %311 = vmatprep.subr.mxu0 0.0
        %312 = vmatpush1.msra.mxu0 %v292
        %313 = vmatprep.subr.mxu0 0.0
        %314 = vmatpush1.msra.mxu0 %v291
        %315 = vmatprep.subr.mxu0 0.0
        %316 = vmatpush1.msra.mxu0 %v290
        %317 = vmatprep.subr.mxu0 0.0
        %318 = vmatpush1.msra.mxu0 %v289
        %319 = vmatprep.subr.mxu0 0.0
        %320 = vmatpush1.msra.mxu0 %v288
        %321 = vmatprep.subr.mxu0 0.0
        %322 = vmatpush1.msra.mxu0 %v287
        %323 = vmatprep.subr.mxu0 0.0
        %324 = vmatpush1.msra.mxu0 %v286
        %325 = vmatprep.subr.mxu0 0.0
        %326 = vmatpush1.msra.mxu0 %v285
        %327 = vmatprep.subr.mxu0 0.0
        %328 = vmatpush1.msra.mxu0 %v284
        %329 = vmatprep.subr.mxu0 0.0
        %330 = vmatpush1.msra.mxu0 %v283
        %331 = vmatprep.subr.mxu0 0.0
        %332 = vmatpush1.msra.mxu0 %v282
        %333 = vmatprep.subr.mxu0 0.0
        %334 = vmatpush1.msra.mxu0 %v281
        %335 = vmatprep.subr.mxu0 0.0
        %336 = vmatpush1.msra.mxu0 %v280
        %337 = vmatprep.subr.mxu0 0.0
        %338 = vmatpush1.msra.mxu0 %v279
        %339 = vmatprep.subr.mxu0 0.0
        %340 = vmatpush2.msra.mxu0 0.0
        %341 = vmatprep.subr.mxu0 0.0
        %342 = vmatpush2.msra.mxu0 0.0
        %343 = vmatprep.subr.mxu0 0.0
        %344 = vmatpush2.msra.mxu0 0.0
        %345 = vmatprep.subr.mxu0 0.0
        %346 = vmatpush2.msra.mxu0 0.0
        %347 = vmatprep.subr.mxu0 0.0
        %348 = vmatpush2.msra.mxu0 0.0
        %349 = vmatprep.subr.mxu0 0.0
        %350 = vmatpush2.msra.mxu0 0.0
        %351 = vmatprep.subr.mxu0 0.0
        %352 = vmatpush2.msra.mxu0 0.0
        %353 = vmatprep.subr.mxu0 0.0
        %354 = vmatpush2.msra.mxu0 0.0
        %355 = vmatprep.subr.mxu0 0.0
        %356 = vmatpush2.msra.mxu0 0.0
        %357 = vmatprep.subr.mxu0 0.0
        %358 = vmatpush2.msra.mxu0 0.0
        %359 = vmatprep.subr.mxu0 0.0
        %360 = vmatpush2.msra.mxu0 0.0
        %361 = vmatprep.subr.mxu0 0.0
        %362 = vmatpush2.msra.mxu0 0.0
        %363 = vmatprep.subr.mxu0 0.0
        %364 = vmatpush2.msra.mxu0 0.0
        %365 = vmatprep.subr.mxu0 0.0
        %366 = vmatpush2.msra.mxu0 0.0
        %367 = vmatprep.subr.mxu0 0.0
        %368 = vmatpush2.msra.mxu0 0.0
        %369 = vmatprep.subr.mxu0 0.0
        %370 = vmatpush2.msra.mxu0 0.0
        %371 = vmatprep.mubr.f32.mxu0 0.0
        %372 = vmatmul.mubr.f32.gmra.mxu0 %v305
        %v373 = vpop.f32.mrf.mxu0
        %v374 = vadd.f32 %v300, %v373
        %v375 = vpop.f32.mrf.mxu0
        %376 = vdwg.mxu0
        %v377 = vmax.f32 %v374, 0.0
        %v378 = vxor.u32 %v377, 2147483648
        %v379 = vmul.f32 %v378, 1.442695
        %v380 = vpow.pop %v379
        %v381 = vadd.f32 %v380, 1.0
        %v382 = vrcp.pop %v381
        %v383 = vmul.f32 1.0, %v382
        %v384 = vld [vmem:[%s3] sm:$0x1]
        %v386 = vlaneseq
        %v387 = vshrl.u32 %v386, 7
        %v388 = vsub.s32 0, %v387
        %v389 = vrot.slane %v384, %v388
        %v391 = vadd.f32 %v383, %v389
        %v394 = vunpack.c.l.s4 1966171168
        %v395 = vunpack.c.0.s8 %v394
        %v396 = vlaneseq
        %v397 = vshrl.u32 %v396, 7
        %v398 = vsub.s32 %v395, %v397
        %v399 = vrot.slane %v391, %v398
        %v400 = vcombine.high %v399, %v399
        %v402 = vunpack.c.l.s4 1966171168
        %v403 = vunpack.c.0.s8 %v402
        %v404 = vlaneseq
        %v405 = vshrl.u32 %v404, 7
        %v406 = vsub.s32 %v403, %v405
        %v407 = vrot.slane %v399, %v406
        %v409 = vunpack.c.l.s4 1966171168
        %v410 = vunpack.c.0.s8 %v409
        %v411 = vlaneseq
        %v412 = vshrl.u32 %v411, 7
        %v413 = vsub.s32 %v410, %v412
        %v414 = vrot.slane %v400, %v413
        %v415 = vlaneseq
        %v416 = vshrl.u32 %v415, 7
        %v417 = vsub.s32 0, %v416
        %v418 = vrot.slane %v407, %v417
        %v419 = vlaneseq
        %v420 = vshrl.u32 %v419, 7
        %v421 = vsub.s32 0, %v420
        %v422 = vrot.slane %v414, %v421
        %v425 = vmul.f32 %v418, %v252
        %v426 = vmul.f32 %v418, %v253
        %v427 = vmul.f32 %v418, %v254
        %v428 = vmul.f32 %v422, %v255
        %v429 = vmul.f32 %v422, %v256
        %v430 = vmul.f32 %v422, %v257
        %431 = vst [vmem:[%s239] sm:$0xff] %v425
        %432 = vst [vmem:[%s239 + $0x8] sm:$0xff] %v426
        %433 = vst [vmem:[%s239 + $0x10] sm:$0xf] %v427
        %434 = vst [vmem:[%s239 + $0x18] sm:$0xff] %v428
        %435 = vst [vmem:[%s239 + $0x20] sm:$0xff] %v429
        %436 = vst [vmem:[%s239 + $0x28] sm:$0xf] %v430
        %s437 = sand.u32 %s119, 1
        %s438 = scalar_lea.sflag [#allocation4], %s437
        %s439 = sand.u32 %s119, 1
        %s440 = smul.addr %s439, 48
        %s441 = scalar_lea.vmem [#allocation7], %s440
        // Predicated region
        $region45: #{tpu_custom_call.1} parent=35 // pred_check
          %p442 = pneg %p129
        $region46: #{tpu_custom_call.1} parent=35 // pred_check_branch
          %444 = sbr.rel (%p442) target = $region48
        $region47: #{tpu_custom_call.1} parent=35 // pred_region
          %s445 = smul.u32 2, %s22
          %s446 = ssub.s32 3, %s445
          %p447 = scmp.lt.s32.totalorder %s446, 2
          %s448 = scalar_select %p447, %s446, 2
          %s449 = smul.u32 128, %s448
          %s450 = smul.u32 %s449, 3
          %s452 = ssub.s32 768, %s450
          %453 = vsyncadd %s438, %s452
          %p454 = scmp.ne.s32.totalorder 0, %s450
          %s455 = smul.addr %s445, 3
          %s456 = smul.addr %s455, 128
          %s457 = scalar_lea.hbm %s4, %s456
          %s458 = smul.u32 %s448, 3
          %s459 = smul.u32 8, %s458
          %s460 = sshll.u32 %s441, 4
          %s461 = int_to_ptr.vmem [resolvable:$true] %s460
          %s462 = sshll.u32 %s459, 4
          %466 = dma.vmem_to_hbm [thread:$0]  (%p454), %s461, %s462, %s457, %s438, 128, 128, 8
        $region48: #{tpu_custom_call.1} parent=35 // pred_fallthru
          _
      $region36: #{tpu_custom_call.1} parent=5 // pred_fallthru
        _
      %p467 = scmp.le.s32.totalorder 2, %s17
      // Predicated region
      $region49: #{tpu_custom_call.1} parent=5 // pred_check
        %p468 = pneg %p467
      $region50: #{tpu_custom_call.1} parent=5 // pred_check_branch
        %470 = sbr.rel (%p468) target = $region52
      $region51: #{tpu_custom_call.1} parent=5 // pred_region
        %s471 = ssub.s32 %s17, 2
        // Predicated region
        $region53: #{tpu_custom_call.1} parent=51 // pred_check
          %p472 = pneg %p135
        $region54: #{tpu_custom_call.1} parent=51 // pred_check_branch
          %474 = sbr.rel (%p472) target = $region56
        $region55: #{tpu_custom_call.1} parent=51 // pred_region
          %s475 = sand.u32 %s120, 1
          %s476 = scalar_lea.sflag [#allocation4], %s475
          %s477 = sand.u32 %s120, 1
          %s478 = smul.addr %s477, 48
          %s479 = scalar_lea.vmem [#allocation7], %s478
          %480 = dma.done %s476, 768
        $region56: #{tpu_custom_call.1} parent=51 // pred_fallthru
          _
      $region52: #{tpu_custom_call.1} parent=5 // pred_fallthru
        _
    $region6: #{tpu_custom_call.1} parent=1 // loop_footer
      %s21 = sadd.s32 1, %s17
    $region7: #{tpu_custom_call.1} parent=1 // loop_footer_branch
      %16 = sbr.rel target = $region3
    $region8: #{tpu_custom_call.1} parent=1 // loop_exit
      _
    %481 = vsyncpa [#allocation3], 1
    %s482 = scalar_lea.sflag [#allocation3], 1
    %483 = vsyncpa %s482, 1
    %484 = vsyncpa [#allocation6], 1
    %485 = vsyncpa [#allocation4], 1
    %s486 = scalar_lea.sflag [#allocation4], 1
    %487 = vsyncpa %s486, 1

</llo_original>
